<compile_context>
chip_gen: v7x
topology: tpu7x:2x2x1
jax: 0.10.0
libtpu: 0.0.40
codegen_flags: <defaults>
</compile_context>

<pallas_src>
import functools

import jax
import jax.numpy as jnp
from jax.experimental import pallas as pl
from jax.experimental.pallas import tpu as pltpu


def _round_up(x, m):
    return ((x + m - 1) // m) * m


def _sublane_multiple(itemsize):
    # Rows per packed sublane group: 8 for 32-bit, 16 for bf16, 32 for int8/fp8.
    return max(8, 32 // itemsize)


def _choose_row_tile(m, w, itemsize):
    """Row tile: dtype-aware sublane multiple, <=512, ~2 MiB streaming tile,
    shrunk so the grid has ~8 steps whenever the row count allows it."""
    sub = _sublane_multiple(itemsize)
    budget = 2 * 1024 * 1024                                   # input tile budget
    cap = max(sub, (budget // max(1, 2 * w * itemsize)) // sub * sub)
    tm = min(512, cap, _round_up(m, sub))
    if m >= 2 * sub:
        # >= ~8 grid steps: megacore sharding on v7x needs >= 2, the software
        # pipeline wants depth; never below one sublane group.
        tm = min(tm, max(sub, _round_up(-(-m // 8), sub)))
    return max(sub, tm)


def _padded_vmem_bytes(rows, cols, itemsize):
    sub = _sublane_multiple(itemsize)
    return _round_up(max(rows, 1), sub) * _round_up(max(cols, 1), 128) * itemsize


# ---------------------------------------------------------------------------
# Kernels: vertical Haar step on the VPU, horizontal compaction on the MXU.
# ---------------------------------------------------------------------------
def _wavepool_kernel_fused(x_ref, hm_ref, ys_ref, yd_ref, *, w):
    """wo < 128: 2 matmuls with the concatenated Haar matrix, lane-dense fused
    stores ys = [LL|LH], yd = [HL|HH] of width 2*wo."""
    x = x_ref[...]                       # (tm, 2*w) = [even row | odd row]
    top = x[:, :w]
    bot = x[:, w:]                       # mid-vreg start if w % 128 != 0; hides under DMA
    s = top + bot                        # vertical low-pass  (kept in input/bf16 dtype)
    d = bot - top                        # vertical high-pass
    hm = hm_ref[...]                     # (w, 2*wo) = [hs | hd], resident (fetched once)
    ys_ref[...] = jnp.dot(s, hm, preferred_element_type=jnp.float32).astype(ys_ref.dtype)
    yd_ref[...] = jnp.dot(d, hm, preferred_element_type=jnp.float32).astype(yd_ref.dtype)


def _wavepool_kernel_direct(x_ref, hs_ref, hd_ref, ll_ref, lh_ref, hl_ref, hh_ref, *, w):
    """wo >= 128: stores already lane-dense; write the four outputs directly
    (separate matmuls avoid mid-vreg lane splits when wo % 128 != 0)."""
    x = x_ref[...]
    top = x[:, :w]
    bot = x[:, w:]
    s = top + bot
    d = bot - top
    hs = hs_ref[...]
    hd = hd_ref[...]
    ll_ref[...] = jnp.dot(s, hs, preferred_element_type=jnp.float32).astype(ll_ref.dtype)
    lh_ref[...] = jnp.dot(s, hd, preferred_element_type=jnp.float32).astype(lh_ref.dtype)
    hl_ref[...] = jnp.dot(d, hs, preferred_element_type=jnp.float32).astype(hl_ref.dtype)
    hh_ref[...] = jnp.dot(d, hd, preferred_element_type=jnp.float32).astype(hh_ref.dtype)


# ---------------------------------------------------------------------------
# WavePool.forward
# ---------------------------------------------------------------------------
@jax.jit
def wave_pool(x):
    """x: (N, C, H, W). Returns (LL, LH, HL, HH), each (N, C, H//2, W//2)."""
    n, ch, h, w = x.shape
    ho, wo = h // 2, w // 2
    if h % 2 or w % 2:                   # PyTorch valid stride-2 conv drops trailing row/col
        x = x[:, :, : 2 * ho, : 2 * wo]
        h, w = 2 * ho, 2 * wo

    if jnp.dtype(x.dtype) not in (jnp.dtype(jnp.float32), jnp.dtype(jnp.bfloat16)):
        x = x.astype(jnp.float32)        # promote exotic dtypes once
    cdt = jnp.dtype(x.dtype)             # compute dtype: f32 or bf16 (bf16 MXU operands)
    itm = cdt.itemsize

    m = n * ch * ho                      # one kernel row per vertical row-pair
    k = 2 * w
    x2 = x.reshape(m, k)                 # free row-major reshape

    # Constant horizontal Haar matrices (compile-time constants under jit):
    #   hs[2j, j] = hs[2j+1, j] = 0.5 ;  hd[2j, j] = -0.5, hd[2j+1, j] = 0.5
    rep = jnp.repeat(jnp.eye(wo, dtype=jnp.float32), 2, axis=0)          # (w, wo)
    hs = (0.5 * rep).astype(cdt)
    hd = (rep * jnp.tile(jnp.array([-0.5, 0.5], jnp.float32), wo)[:, None]).astype(cdt)

    tm = _choose_row_tile(m, w, itm)
    grid = (pl.cdiv(m, tm),)             # ragged last block OK: rows independent

    fuse = wo < 128                      # lane-dense fused stores when wo underfills a vreg

    # Honest VMEM estimate: 2x streaming input, 2x every output buffer, 2x the
    # constants (fetched once thanks to the constant index_map, but allocated
    # double-buffered), all padded to (sublane, 128-lane) tiles + headroom.
    in_buf = _padded_vmem_bytes(tm, k, itm)
    if fuse:
        out_buf = 2 * _padded_vmem_bytes(tm, 2 * wo, itm)
        h_buf = _padded_vmem_bytes(w, 2 * wo, itm)
    else:
        out_buf = 4 * _padded_vmem_bytes(tm, wo, itm)
        h_buf = 2 * _padded_vmem_bytes(w, wo, itm)
    vmem_est = 2 * in_buf + 2 * out_buf + 2 * h_buf
    vmem_limit = int(min(max(vmem_est + (8 << 20), 32 << 20), 64 << 20))
    # TODO(synk): for f32 inputs with W >~ 1024 (v5e especially) the O(W^2)
    # compaction matmul / constants stop hiding under DMA; switch the
    # horizontal step to an XLU pairwise roll + even-lane extract there.

    flops = 8 * m * w * wo + 2 * m * w
    bytes_accessed = m * k * itm + 4 * m * wo * itm + 2 * w * wo * itm
    cost = pl.CostEstimate(flops=flops, transcendentals=0, bytes_accessed=bytes_accessed)
    cparams = pltpu.CompilerParams(
        dimension_semantics=("parallel",), vmem_limit_bytes=vmem_limit)

    if fuse:
        hm = jnp.concatenate([hs, hd], axis=1)                 # (w, 2*wo) = [hs | hd]
        out_sds = jax.ShapeDtypeStruct((m, 2 * wo), cdt)
        ys, yd = pl.pallas_call(
            functools.partial(_wavepool_kernel_fused, w=w),
            out_shape=(out_sds, out_sds),
            grid_spec=pltpu.PrefetchScalarGridSpec(
                num_scalar_prefetch=0,
                grid=grid,
                in_specs=[
                    pl.BlockSpec((tm, k), lambda i: (i, 0)),        # streaming row-pair tile
                    pl.BlockSpec((w, 2 * wo), lambda i: (0, 0)),    # resident Haar matrix
                ],
                out_specs=[
                    pl.BlockSpec((tm, 2 * wo), lambda i: (i, 0)),
                    pl.BlockSpec((tm, 2 * wo), lambda i: (i, 0)),
                ],
            ),
            compiler_params=cparams,
            cost_estimate=cost,
        )(x2, hm)
        ll, lh = ys[:, :wo], ys[:, wo:]
        hl, hh = yd[:, :wo], yd[:, wo:]
    else:
        out_sds = jax.ShapeDtypeStruct((m, wo), cdt)
        ll, lh, hl, hh = pl.pallas_call(
            functools.partial(_wavepool_kernel_direct, w=w),
            out_shape=(out_sds,) * 4,
            grid_spec=pltpu.PrefetchScalarGridSpec(
                num_scalar_prefetch=0,
                grid=grid,
                in_specs=[
                    pl.BlockSpec((tm, k), lambda i: (i, 0)),
                    pl.BlockSpec((w, wo), lambda i: (0, 0)),
                    pl.BlockSpec((w, wo), lambda i: (0, 0)),
                ],
                out_specs=[pl.BlockSpec((tm, wo), lambda i: (i, 0))] * 4,
            ),
            compiler_params=cparams,
            cost_estimate=cost,
        )(x2, hs, hd)

    reshape = lambda o: o.reshape(n, ch, ho, wo)
    return reshape(ll), reshape(lh), reshape(hl), reshape(hh)


class WavePool:
    """Functional equivalent of the PyTorch WavePool module (filters are fixed)."""

    def __init__(self, in_channels):
        self.in_channels = in_channels

    def __call__(self, x):
        assert x.shape[1] == self.in_channels, (x.shape, self.in_channels)
        return wave_pool(x)


if __name__ == "__main__":
    def ref_wavepool(x):
        xf = x.astype(jnp.float32)
        h, w = xf.shape[2], xf.shape[3]
        xf = xf[:, :, : (h // 2) * 2, : (w // 2) * 2]
        a = xf[:, :, 0::2, 0::2]
        b = xf[:, :, 0::2, 1::2]
        c = xf[:, :, 1::2, 0::2]
        d = xf[:, :, 1::2, 1::2]
        return (0.5 * (a + b + c + d), 0.5 * (-a + b - c + d),
                0.5 * (-a - b + c + d), 0.5 * (a - b - c + d))

    def check(x, atol, rtol):
        pool = WavePool(in_channels=x.shape[1])
        outs = jax.block_until_ready(pool(x))
        refs = ref_wavepool(x)
        for o, r in zip(outs, refs):
            assert o.shape == r.shape, (o.shape, r.shape)
            of = o.astype(jnp.float32)
            assert bool(jnp.all(jnp.isfinite(of)))
            err = float(jnp.max(jnp.abs(of - r)))
            assert bool(jnp.allclose(of, r, atol=atol, rtol=rtol)), err

    key = jax.random.PRNGKey(0)
    k1, k2, k3, k4 = jax.random.split(key, 4)

    # 1) primary small case (fused lane-dense store path, wo < 128)
    check(jax.random.normal(k1, (2, 4, 16, 16), jnp.float32), 1e-5, 1e-5)
    # 2) wide case exercising the direct-store path (wo >= 128)
    check(jax.random.normal(k2, (1, 2, 16, 256), jnp.float32), 1e-5, 1e-5)
    # 3) odd H/W (valid stride-2 truncation) + ragged last grid block (masked writes)
    check(jax.random.normal(k3, (1, 3, 19, 15), jnp.float32), 1e-5, 1e-5)
    # 4) bf16 inputs: bf16 MXU operands with f32 accumulation
    check(jax.random.normal(k4, (2, 3, 32, 32), jnp.float32).astype(jnp.bfloat16),
          5e-2, 5e-2)

    print("KERNEL_OK")
</pallas_src>

<mosaic_0001>
module attributes {stable_mosaic.version = 11 : i64} {
  func.func @_wavepool_kernel_fused(%arg0: i32, %arg1: memref<8x32xf32, #tpu.memory_space<vmem>>, %arg2: memref<16x16xf32, #tpu.memory_space<vmem>>, %arg3: memref<8x16xf32, #tpu.memory_space<vmem>>, %arg4: memref<8x16xf32, #tpu.memory_space<vmem>>) attributes {dimension_semantics = [#tpu.dimension_semantics<parallel>], iteration_bounds = array<i64: 8>, scalar_prefetch = 0 : i64, scratch_operands = 0 : i64, tpu.core_type = #tpu.core_type<tc>, window_params = [{transform_indices = @transform_0, window_bounds = array<i64: 8, 32>}, {pipeline_mode = #tpu.pipeline_mode<synchronous>, transform_indices = @transform_1, window_bounds = array<i64: 16, 16>}, {transform_indices = @transform_2, window_bounds = array<i64: 8, 16>}, {transform_indices = @transform_3, window_bounds = array<i64: 8, 16>}]} {
    %c0 = arith.constant 0 : index
    %c0_0 = arith.constant 0 : index
    %0 = vector.load %arg1[%c0, %c0_0] : memref<8x32xf32, #tpu.memory_space<vmem>>, vector<8x32xf32>
    %1 = vector.extract_strided_slice %0 {offsets = [0, 0], sizes = [8, 16], strides = [1, 1]} : vector<8x32xf32> to vector<8x16xf32>
    %2 = vector.extract_strided_slice %0 {offsets = [0, 16], sizes = [8, 16], strides = [1, 1]} : vector<8x32xf32> to vector<8x16xf32>
    %3 = arith.addf %1, %2 : vector<8x16xf32>
    %4 = arith.subf %2, %1 : vector<8x16xf32>
    %c0_1 = arith.constant 0 : index
    %c0_2 = arith.constant 0 : index
    %5 = vector.load %arg2[%c0_1, %c0_2] : memref<16x16xf32, #tpu.memory_space<vmem>>, vector<16x16xf32>
    %cst = arith.constant dense<0.000000e+00> : vector<8x16xf32>
    %6 = tpu.matmul %3, %5, %cst {dimension_numbers = #tpu.dot_dimension_numbers<[1], [0], [0], [1], [0, 0, 1, 1], [], []>} : vector<8x16xf32>, vector<16x16xf32>, vector<8x16xf32> -> vector<8x16xf32>
    %c0_3 = arith.constant 0 : index
    %c0_4 = arith.constant 0 : index
    %7 = vector.load %arg3[%c0_3, %c0_4] : memref<8x16xf32, #tpu.memory_space<vmem>>, vector<8x16xf32>
    tpu.vector_store %arg3[%c0_3, %c0_4], %6 {strides = array<i32>} : memref<8x16xf32, #tpu.memory_space<vmem>>, vector<8x16xf32>,
    %cst_5 = arith.constant dense<0.000000e+00> : vector<8x16xf32>
    %8 = tpu.matmul %4, %5, %cst_5 {dimension_numbers = #tpu.dot_dimension_numbers<[1], [0], [0], [1], [0, 0, 1, 1], [], []>} : vector<8x16xf32>, vector<16x16xf32>, vector<8x16xf32> -> vector<8x16xf32>
    %c0_6 = arith.constant 0 : index
    %c0_7 = arith.constant 0 : index
    %9 = vector.load %arg4[%c0_6, %c0_7] : memref<8x16xf32, #tpu.memory_space<vmem>>, vector<8x16xf32>
    tpu.vector_store %arg4[%c0_6, %c0_7], %8 {strides = array<i32>} : memref<8x16xf32, #tpu.memory_space<vmem>>, vector<8x16xf32>,
    return
  }
  func.func @transform_0(%arg0: i32) -> (i32, i32) {
    %c0_i32 = arith.constant 0 : i32
    %c0_i32_0 = arith.constant 0 : i32
    return %arg0, %c0_i32 : i32, i32
  }
  func.func @transform_1(%arg0: i32) -> (i32, i32) {
    %c0_i32 = arith.constant 0 : i32
    %c0_i32_0 = arith.constant 0 : i32
    %c0_i32_1 = arith.constant 0 : i32
    return %c0_i32, %c0_i32_0 : i32, i32
  }
  func.func @transform_2(%arg0: i32) -> (i32, i32) {
    %c0_i32 = arith.constant 0 : i32
    %c0_i32_0 = arith.constant 0 : i32
    return %arg0, %c0_i32 : i32, i32
  }
  func.func @transform_3(%arg0: i32) -> (i32, i32) {
    %c0_i32 = arith.constant 0 : i32
    %c0_i32_0 = arith.constant 0 : i32
    return %arg0, %c0_i32 : i32, i32
  }
}

</mosaic_0001>

<llo_original>
// kernel: tile.6
$region0: #{tile.6}
  #allocation0 [shape = 's32[1]{0}', space=sflag, size = 0x4, scoped, tag = 'scoped memory for tile.6']
  %s0 = inlined_call_operand.vmem [shape: f32[2], index: 0, kind: input, shape index: {}]
  %s1 = inlined_call_operand.vmem [shape: f32[8,2], index: 1, kind: output, shape index: {}]
  // Predicated region
  $region2: #{tile.6} parent=0 // pred_check
    _
  $region3: #{tile.6} parent=0 // pred_check_branch
    %3 = sbr.rel (0) target = $region5
  $region4: #{tile.6} parent=0 // pred_region
    _
  $region5: #{tile.6} parent=0 // pred_fallthru
    _
  %v4 = vld [vmem:[%s0] ss:$0 sm:$0xff]
  %5 = vst [vmem:[%s1] sm:$0xff] %v4

// kernel: mul.9
$region0: #{mul.9}
  %s0 = inlined_call_operand.vmem [shape: f32[8,2], index: 0, kind: input, shape index: {}]
  %s1 = inlined_call_operand.vmem [shape: f32[16], index: 1, kind: output, shape index: {}]
  $region1: #{mul.9} parent=0
    #allocation0 [shape = 'u8[4096]{0}', space=vmem, size = 0x1000, scoped, tag = 'scoped mem for output reshape']
    %v2 = vld [vmem:[%s0] sm:$0x1]
    %vm3 = vcmask 15360
    %4 = vst.msk [vmem:[#allocation0] sm:$0x1] %vm3, %v2
    %s5 = scalar_lea.vmem %s0, 7
    %v6 = vld [vmem:[%s5] sm:$0x1]
    %7 = vrot.lane.b32.xlu0 %v6, 14
    %v8 = vpop.permute.xlu0 %7
    %vm9 = vcmask 130160
    %10 = vst.msk [vmem:[#allocation0] sm:$0x1] %vm9, %v8
    %s11 = scalar_lea.vmem %s0, 6
    %v12 = vld [vmem:[%s11] sm:$0x1]
    %13 = vrot.lane.b32.xlu0 %v12, 12
    %v14 = vpop.permute.xlu0 %13
    %vm15 = vcmask 113760
    %16 = vst.msk [vmem:[#allocation0] sm:$0x1] %vm15, %v14
    %s17 = scalar_lea.vmem %s0, 5
    %v18 = vld [vmem:[%s17] sm:$0x1]
    %19 = vrot.lane.b32.xlu0 %v18, 10
    %v20 = vpop.permute.xlu0 %19
    %vm21 = vcmask 97360
    %22 = vst.msk [vmem:[#allocation0] sm:$0x1] %vm21, %v20
    %s23 = scalar_lea.vmem %s0, 4
    %v24 = vld [vmem:[%s23] sm:$0x1]
    %25 = vrot.lane.b32.xlu0 %v24, 8
    %v26 = vpop.permute.xlu0 %25
    %vm27 = vcmask 80960
    %28 = vst.msk [vmem:[#allocation0] sm:$0x1] %vm27, %v26
    %s29 = scalar_lea.vmem %s0, 3
    %v30 = vld [vmem:[%s29] sm:$0x1]
    %31 = vrot.lane.b32.xlu0 %v30, 6
    %v32 = vpop.permute.xlu0 %31
    %vm33 = vcmask 64560
    %34 = vst.msk [vmem:[#allocation0] sm:$0x1] %vm33, %v32
    %s35 = scalar_lea.vmem %s0, 2
    %v36 = vld [vmem:[%s35] sm:$0x1]
    %37 = vrot.lane.b32.xlu0 %v36, 4
    %v38 = vpop.permute.xlu0 %37
    %vm39 = vcmask 48160
    %40 = vst.msk [vmem:[#allocation0] sm:$0x1] %vm39, %v38
    %s41 = scalar_lea.vmem %s0, 1
    %v42 = vld [vmem:[%s41] sm:$0x1]
    %43 = vrot.lane.b32.xlu0 %v42, 2
    %v44 = vpop.permute.xlu0 %43
    %vm45 = vcmask 31760
    %46 = vst.msk [vmem:[#allocation0] sm:$0x1] %vm45, %v44
    %s48 = sshllo.u32 0, 1
    %v50 = vld [vmem:[#allocation0] sm:%s48]
    %s51 = sshllo.u32 0, 1
    %52 = vst [vmem:[%s1] sm:%s51] %v50

// kernel: wave_pool.1
$region0: #{wave_pool.1}
  #allocation0 [shape = 'u32[]', space=smem, size = 0x4, offset = 0x4, fixed_abs, tag = 'smem constant byte address 0x4 - core index']
  #allocation1 [shape = 'u32[144,128]{1,0:T(1,128)}', space=vmem, size = 0x12000, scoped, tag = 'internal scratch']
  %s0 = inlined_call_operand.vmem [shape: f32[64,32], index: 0, kind: input, shape index: {}]
  %s1 = inlined_call_operand.vmem [shape: f32[16,16], index: 1, kind: input, shape index: {}]
  %s2 = inlined_call_operand.vmem [shape: f32[64,16], index: 2, kind: output, shape index: {0}]
  %s3 = inlined_call_operand.vmem [shape: f32[64,16], index: 3, kind: output, shape index: {1}]
  %4 = xla_tuple %s2, %s3
  %s5 = sld [smem:[#allocation0]]
  $region49: #{wave_pool.1} parent=0
    _
  %s7 = ssub.s32 1, %s5
  %s8 = scalar_select 0, %s7, %s5
  loop: start=0, step=1, limit=10
  $region2: #{wave_pool.1} parent=0 // loop_pre_header
    _
  $region3: #{wave_pool.1} parent=0 // loop_header
    %s10 = sphi 0, %s14
    %p11 = scmp.ge.s32.totalorder %s10, 10
    %s20 = sphi 0, %s22
    %s23 = sphi 0, %s20
    %s24 = sphi 0, %s23
    %s40 = sphi 0, %s24
    %s44 = sphi 0, %s44
    %s46 = sphi 0, %s44
    %s47 = sphi 0, %s46
    %s61 = sphi 0, %s47
    %s67 = sphi 0, %s69
    %s70 = sphi 0, %s67
    %s71 = sphi 0, %s70
    %s87 = sphi 0, %s71
    %s93 = sphi 0, %s95
    %s96 = sphi 0, %s93
    %s97 = sphi 0, %s96
    %s113 = sphi 0, %s97
  $region4: #{wave_pool.1} parent=0 // loop_header_branch
    %13 = sbr.rel (%p11) target = $region8
  $region5: #{wave_pool.1} parent=0 // loop_body
    %s15 = ssub.s32 %s10, 1
    %s16 = ssub.s32 %s10, 2
    %s17 = sadd.s32 %s10, 1
    %s18 = ssub.s32 %s10, %s17
    %p19 = scmp.eq.s32.totalorder %s18, 0
    %s21 = sadd.s32 %s20, 1
    %s22 = scalar_select %p19, %s20, %s21
    %p25 = pneg %p19
    %p26 = scmp.eq.s32.totalorder %s10, 7
    %p27 = por %p25, %p26
    %p28 = scmp.ne.s32.totalorder %s20, %s23
    %p29 = scmp.eq.s32.totalorder %s10, 0
    %p30 = por %p28, %p29
    %p31 = scmp.ne.s32.totalorder %s20, %s23
    %p32 = scmp.eq.s32.totalorder %s15, 7
    %p33 = por %p31, %p32
    %p34 = scmp.ne.s32.totalorder %s23, %s24
    %p35 = scmp.eq.s32.totalorder %s15, 0
    %p36 = por %p34, %p35
    %p37 = scmp.ne.s32.totalorder %s23, %s24
    %p38 = scmp.eq.s32.totalorder %s16, 7
    %p39 = por %p37, %p38
    %p41 = scmp.ne.s32.totalorder %s24, %s40
    %p42 = scmp.eq.s32.totalorder %s16, 0
    %p43 = por %p41, %p42
    %s45 = sadd.s32 %s44, 1
    %p48 = scmp.eq.s32.totalorder %s10, 7
    %p49 = scmp.ne.s32.totalorder %s44, %s46
    %p50 = scmp.eq.s32.totalorder %s10, 0
    %p51 = por %p49, %p50
    %p52 = scmp.ne.s32.totalorder %s44, %s46
    %p53 = scmp.eq.s32.totalorder %s15, 7
    %p54 = por %p52, %p53
    %p55 = scmp.ne.s32.totalorder %s46, %s47
    %p56 = scmp.eq.s32.totalorder %s15, 0
    %p57 = por %p55, %p56
    %p58 = scmp.ne.s32.totalorder %s46, %s47
    %p59 = scmp.eq.s32.totalorder %s16, 7
    %p60 = por %p58, %p59
    %p62 = scmp.ne.s32.totalorder %s47, %s61
    %p63 = scmp.eq.s32.totalorder %s16, 0
    %p64 = por %p62, %p63
    %s65 = ssub.s32 %s10, %s17
    %p66 = scmp.eq.s32.totalorder %s65, 0
    %s68 = sadd.s32 %s67, 1
    %s69 = scalar_select %p66, %s67, %s68
    %p72 = pneg %p66
    %p73 = scmp.eq.s32.totalorder %s10, 7
    %p74 = por %p72, %p73
    %p75 = scmp.ne.s32.totalorder %s67, %s70
    %p76 = scmp.eq.s32.totalorder %s10, 0
    %p77 = por %p75, %p76
    %p78 = scmp.ne.s32.totalorder %s67, %s70
    %p79 = scmp.eq.s32.totalorder %s15, 7
    %p80 = por %p78, %p79
    %p81 = scmp.ne.s32.totalorder %s70, %s71
    %p82 = scmp.eq.s32.totalorder %s15, 0
    %p83 = por %p81, %p82
    %p84 = scmp.ne.s32.totalorder %s70, %s71
    %p85 = scmp.eq.s32.totalorder %s16, 7
    %p86 = por %p84, %p85
    %p88 = scmp.ne.s32.totalorder %s71, %s87
    %p89 = scmp.eq.s32.totalorder %s16, 0
    %p90 = por %p88, %p89
    %s91 = ssub.s32 %s10, %s17
    %p92 = scmp.eq.s32.totalorder %s91, 0
    %s94 = sadd.s32 %s93, 1
    %s95 = scalar_select %p92, %s93, %s94
    %p98 = pneg %p92
    %p99 = scmp.eq.s32.totalorder %s10, 7
    %p100 = por %p98, %p99
    %p101 = scmp.ne.s32.totalorder %s93, %s96
    %p102 = scmp.eq.s32.totalorder %s10, 0
    %p103 = por %p101, %p102
    %p104 = scmp.ne.s32.totalorder %s93, %s96
    %p105 = scmp.eq.s32.totalorder %s15, 7
    %p106 = por %p104, %p105
    %p107 = scmp.ne.s32.totalorder %s96, %s97
    %p108 = scmp.eq.s32.totalorder %s15, 0
    %p109 = por %p107, %p108
    %p110 = scmp.ne.s32.totalorder %s96, %s97
    %p111 = scmp.eq.s32.totalorder %s16, 7
    %p112 = por %p110, %p111
    %p114 = scmp.ne.s32.totalorder %s97, %s113
    %p115 = scmp.eq.s32.totalorder %s16, 0
    %p116 = por %p114, %p115
    %p117 = scmp.le.s32.totalorder 1, %s10
    %p118 = scmp.lt.s32.totalorder %s10, 9
    %p119 = pnand %p117, %p118
    %p120 = pneg %p119
    // Predicated region
    $region9: #{wave_pool.1} parent=5 // pred_check
      _
    $region10: #{wave_pool.1} parent=5 // pred_check_branch
      %122 = sbr.rel (%p119) target = $region12
    $region11: #{wave_pool.1} parent=5 // pred_region
      %s123 = ssub.s32 %s10, 1
      // Predicated region
      $region13: #{wave_pool.1} parent=11 // pred_check
        %p124 = pneg %p57
      $region14: #{wave_pool.1} parent=11 // pred_check_branch
        %126 = sbr.rel (%p124) target = $region16
      $region15: #{wave_pool.1} parent=11 // pred_region
        _
      $region16: #{wave_pool.1} parent=11 // pred_fallthru
        _
    $region12: #{wave_pool.1} parent=5 // pred_fallthru
      _
    %p127 = scmp.lt.s32.totalorder %s10, 8
    // Predicated region
    $region17: #{wave_pool.1} parent=5 // pred_check
      %p128 = pneg %p127
    $region18: #{wave_pool.1} parent=5 // pred_check_branch
      %130 = sbr.rel (%p128) target = $region20
    $region19: #{wave_pool.1} parent=5 // pred_region
      // Predicated region
      $region21: #{wave_pool.1} parent=19 // pred_check
        %p131 = pneg %p30
      $region22: #{wave_pool.1} parent=19 // pred_check_branch
        %133 = sbr.rel (%p131) target = $region24
      $region23: #{wave_pool.1} parent=19 // pred_region
        %p134 = scmp.lt.s32.totalorder %s10, 7
        %s135 = scalar_select %p134, %s10, 7
        %s136 = smul.addr %s135, 8
        %s137 = scalar_lea.vmem %s0, %s136
      $region24: #{wave_pool.1} parent=19 // pred_fallthru
        _
    $region20: #{wave_pool.1} parent=5 // pred_fallthru
      _
    %p138 = scmp.le.s32.totalorder 1, %s10
    %p139 = scmp.lt.s32.totalorder %s10, 9
    %p140 = pnand %p138, %p139
    %p141 = pneg %p140
    // Predicated region
    $region25: #{wave_pool.1} parent=5 // pred_check
      _
    $region26: #{wave_pool.1} parent=5 // pred_check_branch
      %143 = sbr.rel (%p140) target = $region28
    $region27: #{wave_pool.1} parent=5 // pred_region
      %s144 = ssub.s32 %s10, 1
      %p145 = scmp.lt.s32.totalorder %s15, 7
      %s146 = scalar_select %p145, %s15, 7
      %s147 = smul.addr %s146, 8
      %s148 = scalar_lea.vmem %s0, %s147
      %p149 = pneg %p36
      %p150 = pneg %p33
      %p151 = pneg %p57
      %p152 = pneg %p54
      %p153 = pneg %p83
      %p154 = pneg %p80
      %p155 = scmp.lt.s32.totalorder %s15, 7
      %s156 = scalar_select %p155, %s15, 7
      %s157 = smul.addr %s156, 8
      %s158 = scalar_lea.vmem %s2, %s157
      %p159 = pneg %p109
      %p160 = pneg %p106
      %p161 = scmp.lt.s32.totalorder %s15, 7
      %s162 = scalar_select %p161, %s15, 7
      %s163 = smul.addr %s162, 8
      %s164 = scalar_lea.vmem %s3, %s163
      %p165 = scmp.lt.s32.totalorder %s15, 7
      %s166 = scalar_select %p165, %s15, 7
      %s167 = smul.addr %s166, 8
      %s168 = scalar_lea.vmem %s0, %s167
      %p169 = scmp.lt.s32.totalorder %s15, 7
      %s170 = scalar_select %p169, %s15, 7
      %s171 = smul.addr %s170, 8
      %s172 = scalar_lea.vmem %s2, %s171
      %p173 = scmp.lt.s32.totalorder %s15, 7
      %s174 = scalar_select %p173, %s15, 7
      %s175 = smul.addr %s174, 8
      %s176 = scalar_lea.vmem %s3, %s175
      %v177 = vld [vmem:[%s168] sm:$0xff]
      %179 = vrot.lane.b32.xlu0 %v177, 112
      %v180 = vpop.permute.xlu0 %179
      %v182 = vadd.f32 %v177, %v180
      %183 = vrot.lane.b32.xlu0 %v177, 16
      %v184 = vpop.permute.xlu0 %183
      %v186 = vsub.f32 %v177, %v184
      %v187 = vld [vmem:[%s1] sm:$0xff]
      %v188 = vld [vmem:[%s1 + $0x8] sm:$0xff]
      %vm189 = vcmask 130048
      %v191 = vsel %vm189, %v182, 0
      %193 = vmatprep.subr.mxu0 0.0
      %194 = vmatpush1.msra.mxu0 %v187
      %195 = vmatprep.subr.mxu0 0.0
      %196 = vmatpush1.msra.mxu0 %v188
      %197 = vmatprep.subr.mxu0 0.0
      %198 = vmatpush1.msra.mxu0 0.0
      %199 = vmatprep.subr.mxu0 0.0
      %200 = vmatpush1.msra.mxu0 0.0
      %201 = vmatprep.subr.mxu0 0.0
      %202 = vmatpush1.msra.mxu0 0.0
      %203 = vmatprep.subr.mxu0 0.0
      %204 = vmatpush1.msra.mxu0 0.0
      %205 = vmatprep.subr.mxu0 0.0
      %206 = vmatpush1.msra.mxu0 0.0
      %207 = vmatprep.subr.mxu0 0.0
      %208 = vmatpush1.msra.mxu0 0.0
      %209 = vmatprep.subr.mxu0 0.0
      %210 = vmatpush1.msra.mxu0 0.0
      %211 = vmatprep.subr.mxu0 0.0
      %212 = vmatpush1.msra.mxu0 0.0
      %213 = vmatprep.subr.mxu0 0.0
      %214 = vmatpush1.msra.mxu0 0.0
      %215 = vmatprep.subr.mxu0 0.0
      %216 = vmatpush1.msra.mxu0 0.0
      %217 = vmatprep.subr.mxu0 0.0
      %218 = vmatpush1.msra.mxu0 0.0
      %219 = vmatprep.subr.mxu0 0.0
      %220 = vmatpush1.msra.mxu0 0.0
      %221 = vmatprep.subr.mxu0 0.0
      %222 = vmatpush1.msra.mxu0 0.0
      %223 = vmatprep.subr.mxu0 0.0
      %224 = vmatpush1.msra.mxu0 0.0
      %225 = vmatprep.subr.mxu0 0.0
      %226 = vmatpush1.msra.mxu0 0.0
      %227 = vmatprep.subr.mxu0 0.0
      %228 = vmatpush1.msra.mxu0 0.0
      %229 = vmatprep.subr.mxu0 0.0
      %230 = vmatpush1.msra.mxu0 0.0
      %231 = vmatprep.subr.mxu0 0.0
      %232 = vmatpush1.msra.mxu0 0.0
      %233 = vmatprep.subr.mxu0 0.0
      %234 = vmatpush1.msra.mxu0 0.0
      %235 = vmatprep.subr.mxu0 0.0
      %236 = vmatpush1.msra.mxu0 0.0
      %237 = vmatprep.subr.mxu0 0.0
      %238 = vmatpush1.msra.mxu0 0.0
      %239 = vmatprep.subr.mxu0 0.0
      %240 = vmatpush1.msra.mxu0 0.0
      %241 = vmatprep.subr.mxu0 0.0
      %242 = vmatpush1.msra.mxu0 0.0
      %243 = vmatprep.subr.mxu0 0.0
      %244 = vmatpush1.msra.mxu0 0.0
      %245 = vmatprep.subr.mxu0 0.0
      %246 = vmatpush1.msra.mxu0 0.0
      %247 = vmatprep.subr.mxu0 0.0
      %248 = vmatpush1.msra.mxu0 0.0
      %249 = vmatprep.subr.mxu0 0.0
      %250 = vmatpush1.msra.mxu0 0.0
      %251 = vmatprep.subr.mxu0 0.0
      %252 = vmatpush1.msra.mxu0 0.0
      %253 = vmatprep.subr.mxu0 0.0
      %254 = vmatpush1.msra.mxu0 0.0
      %255 = vmatprep.subr.mxu0 0.0
      %256 = vmatpush1.msra.mxu0 0.0
      %257 = vmatprep.mubr.f32.mxu0 0.0
      %258 = vmatmul.mubr.f32.gmra.mrb[0].mxu0 %v191
      %v259 = vpop.f32.mrb[0].mxu0
      %v260 = vadd.f32 0.0, %v259
      %v261 = vpop.f32.mrb[0].mxu0
      %262 = vdwg.mxu0
      %263 = vst.msk [vmem:[%s172] sm:$0xff] %vm189, %v260
      %265 = vrot.lane.b32.xlu0 %v186, 112
      %v266 = vpop.permute.xlu0 %265
      %v267 = vsel %vm189, %v266, 0
      %269 = vmatprep.subr.mxu0 0.0
      %270 = vmatpush1.msra.mxu0 %v187
      %271 = vmatprep.subr.mxu0 0.0
      %272 = vmatpush1.msra.mxu0 %v188
      %273 = vmatprep.subr.mxu0 0.0
      %274 = vmatpush1.msra.mxu0 0.0
      %275 = vmatprep.subr.mxu0 0.0
      %276 = vmatpush1.msra.mxu0 0.0
      %277 = vmatprep.subr.mxu0 0.0
      %278 = vmatpush1.msra.mxu0 0.0
      %279 = vmatprep.subr.mxu0 0.0
      %280 = vmatpush1.msra.mxu0 0.0
      %281 = vmatprep.subr.mxu0 0.0
      %282 = vmatpush1.msra.mxu0 0.0
      %283 = vmatprep.subr.mxu0 0.0
      %284 = vmatpush1.msra.mxu0 0.0
      %285 = vmatprep.subr.mxu0 0.0
      %286 = vmatpush1.msra.mxu0 0.0
      %287 = vmatprep.subr.mxu0 0.0
      %288 = vmatpush1.msra.mxu0 0.0
      %289 = vmatprep.subr.mxu0 0.0
      %290 = vmatpush1.msra.mxu0 0.0
      %291 = vmatprep.subr.mxu0 0.0
      %292 = vmatpush1.msra.mxu0 0.0
      %293 = vmatprep.subr.mxu0 0.0
      %294 = vmatpush1.msra.mxu0 0.0
      %295 = vmatprep.subr.mxu0 0.0
      %296 = vmatpush1.msra.mxu0 0.0
      %297 = vmatprep.subr.mxu0 0.0
      %298 = vmatpush1.msra.mxu0 0.0
      %299 = vmatprep.subr.mxu0 0.0
      %300 = vmatpush1.msra.mxu0 0.0
      %301 = vmatprep.subr.mxu0 0.0
      %302 = vmatpush1.msra.mxu0 0.0
      %303 = vmatprep.subr.mxu0 0.0
      %304 = vmatpush1.msra.mxu0 0.0
      %305 = vmatprep.subr.mxu0 0.0
      %306 = vmatpush1.msra.mxu0 0.0
      %307 = vmatprep.subr.mxu0 0.0
      %308 = vmatpush1.msra.mxu0 0.0
      %309 = vmatprep.subr.mxu0 0.0
      %310 = vmatpush1.msra.mxu0 0.0
      %311 = vmatprep.subr.mxu0 0.0
      %312 = vmatpush1.msra.mxu0 0.0
      %313 = vmatprep.subr.mxu0 0.0
      %314 = vmatpush1.msra.mxu0 0.0
      %315 = vmatprep.subr.mxu0 0.0
      %316 = vmatpush1.msra.mxu0 0.0
      %317 = vmatprep.subr.mxu0 0.0
      %318 = vmatpush1.msra.mxu0 0.0
      %319 = vmatprep.subr.mxu0 0.0
      %320 = vmatpush1.msra.mxu0 0.0
      %321 = vmatprep.subr.mxu0 0.0
      %322 = vmatpush1.msra.mxu0 0.0
      %323 = vmatprep.subr.mxu0 0.0
      %324 = vmatpush1.msra.mxu0 0.0
      %325 = vmatprep.subr.mxu0 0.0
      %326 = vmatpush1.msra.mxu0 0.0
      %327 = vmatprep.subr.mxu0 0.0
      %328 = vmatpush1.msra.mxu0 0.0
      %329 = vmatprep.subr.mxu0 0.0
      %330 = vmatpush1.msra.mxu0 0.0
      %331 = vmatprep.subr.mxu0 0.0
      %332 = vmatpush1.msra.mxu0 0.0
      %333 = vmatprep.mubr.f32.mxu0 0.0
      %334 = vmatmul.mubr.f32.gmra.mrb[0].mxu0 %v267
      %v335 = vpop.f32.mrb[0].mxu0
      %v336 = vadd.f32 0.0, %v335
      %v337 = vpop.f32.mrb[0].mxu0
      %338 = vdwg.mxu0
      %339 = vst.msk [vmem:[%s176] sm:$0xff] %vm189, %v336
      %p340 = scmp.lt.s32.totalorder %s15, 7
      %s341 = scalar_select %p340, %s15, 7
      %s342 = smul.addr %s341, 8
      %s343 = scalar_lea.vmem %s2, %s342
      %p344 = scmp.lt.s32.totalorder %s15, 7
      %s345 = scalar_select %p344, %s15, 7
      %s346 = smul.addr %s345, 8
      %s347 = scalar_lea.vmem %s3, %s346
      // Predicated region
      $region29: #{wave_pool.1} parent=27 // pred_check
        %p348 = pneg %p80
      $region30: #{wave_pool.1} parent=27 // pred_check_branch
        %350 = sbr.rel (%p348) target = $region32
      $region31: #{wave_pool.1} parent=27 // pred_region
        _
      $region32: #{wave_pool.1} parent=27 // pred_fallthru
        _
      // Predicated region
      $region33: #{wave_pool.1} parent=27 // pred_check
        %p351 = pneg %p106
      $region34: #{wave_pool.1} parent=27 // pred_check_branch
        %353 = sbr.rel (%p351) target = $region36
      $region35: #{wave_pool.1} parent=27 // pred_region
        _
      $region36: #{wave_pool.1} parent=27 // pred_fallthru
        _
    $region28: #{wave_pool.1} parent=5 // pred_fallthru
      _
    %p354 = scmp.le.s32.totalorder 2, %s10
    // Predicated region
    $region37: #{wave_pool.1} parent=5 // pred_check
      %p355 = pneg %p354
    $region38: #{wave_pool.1} parent=5 // pred_check_branch
      %357 = sbr.rel (%p355) target = $region40
    $region39: #{wave_pool.1} parent=5 // pred_region
      %s358 = ssub.s32 %s10, 2
      // Predicated region
      $region41: #{wave_pool.1} parent=39 // pred_check
        %p359 = pneg %p86
      $region42: #{wave_pool.1} parent=39 // pred_check_branch
        %361 = sbr.rel (%p359) target = $region44
      $region43: #{wave_pool.1} parent=39 // pred_region
        %p362 = scmp.lt.s32.totalorder %s16, 7
        %s363 = scalar_select %p362, %s16, 7
        %s364 = smul.addr %s363, 8
        %s365 = scalar_lea.vmem %s2, %s364
      $region44: #{wave_pool.1} parent=39 // pred_fallthru
        _
      // Predicated region
      $region45: #{wave_pool.1} parent=39 // pred_check
        %p366 = pneg %p112
      $region46: #{wave_pool.1} parent=39 // pred_check_branch
        %368 = sbr.rel (%p366) target = $region48
      $region47: #{wave_pool.1} parent=39 // pred_region
        %p369 = scmp.lt.s32.totalorder %s16, 7
        %s370 = scalar_select %p369, %s16, 7
        %s371 = smul.addr %s370, 8
        %s372 = scalar_lea.vmem %s3, %s371
      $region48: #{wave_pool.1} parent=39 // pred_fallthru
        _
    $region40: #{wave_pool.1} parent=5 // pred_fallthru
      _
  $region6: #{wave_pool.1} parent=0 // loop_footer
    %s14 = sadd.s32 1, %s10
  $region7: #{wave_pool.1} parent=0 // loop_footer_branch
    %9 = sbr.rel target = $region3
  $region8: #{wave_pool.1} parent=0 // loop_exit
    _

</llo_original>
